<compile_context>
chip_gen: v6e
topology: v6e:2x2x1
jax: 0.10.0
libtpu: 0.0.40
codegen_flags: <defaults>
</compile_context>

<pallas_src>
import jax
import jax.numpy as jnp
from jax.experimental import pallas as pl
from jax.experimental.pallas import tpu as pltpu


def nsp_head_kernel(x_ref, w_ref, b_ref, o_ref):
    # x_ref: (TILE_B, D) VMEM   w_ref: (2, D) VMEM (native nn.Linear layout)
    # b_ref: (2,) SMEM          o_ref: (TILE_B, 2) VMEM
    x = x_ref[...].astype(jnp.float32)   # f32 accumulate (bf16-safe, incl. v5e)
    w = w_ref[...].astype(jnp.float32)
    # Two weight rows -> two VPU multiplies + lane (XLU) reductions; the MXU is
    # deliberately not used (N=2 would be <2% column utilization).
    l0 = jnp.sum(x * w[0:1, :], axis=-1, keepdims=True) + b_ref[0]
    l1 = jnp.sum(x * w[1:2, :], axis=-1, keepdims=True) + b_ref[1]
    o_ref[...] = jnp.concatenate([l0, l1], axis=-1).astype(o_ref.dtype)


def bert_nsp_head(pooled_output, weight, bias, *, tile_b=512):
    """pooled_output: (B, D); weight: (2, D) [PyTorch layout]; bias: (2,)."""
    B, D = pooled_output.shape
    assert weight.shape == (2, D) and bias.shape == (2,)

    # Tile the batch so the x stream is pipelined (double-buffered) instead of
    # landing in VMEM as one giant block. 512 rows is a multiple of 8 and keeps
    # 2 * tile_b * D * 4B far below v7x's 64 MiB VMEM for any realistic d_model.
    tile_b = min(tile_b, B)
    grid_b = pl.cdiv(B, tile_b)   # partial last tile: padded rows never alias
                                  # valid output rows (reduction is along D only)

    x_bytes = jnp.dtype(pooled_output.dtype).itemsize
    w_bytes = jnp.dtype(weight.dtype).itemsize
    cost = pl.CostEstimate(
        flops=4 * B * D,
        transcendentals=0,
        bytes_accessed=B * D * x_bytes + 2 * D * w_bytes + B * 2 * x_bytes,
    )

    return pl.pallas_call(
        nsp_head_kernel,
        out_shape=jax.ShapeDtypeStruct((B, 2), pooled_output.dtype),
        grid_spec=pltpu.PrefetchScalarGridSpec(
            num_scalar_prefetch=0,
            grid=(grid_b,),
            in_specs=[
                pl.BlockSpec((tile_b, D), lambda i: (i, 0)),          # streamed x
                pl.BlockSpec((2, D), lambda i: (0, 0)),               # resident W (native layout)
                pl.BlockSpec(memory_space=pltpu.MemorySpace.SMEM),    # bias scalars
            ],
            out_specs=pl.BlockSpec((tile_b, 2), lambda i: (i, 0)),
        ),
        compiler_params=pltpu.CompilerParams(
            dimension_semantics=("parallel",)),  # independent batch tiles → megacore on v7x
        cost_estimate=cost,
    )(pooled_output, weight, bias)


if __name__ == "__main__":
    # NOTE: at this toy shape the custom kernel is pure overhead; in a real
    # model fuse the NSP head into the pooler or leave it to XLA for tiny B.
    batch = 2
    d_model = 32

    key = jax.random.PRNGKey(0)
    k_x, k_w, k_b = jax.random.split(key, 3)

    # PyTorch nn.Linear parameter layout: weight (2, d_model), bias (2,)
    bound = 1.0 / jnp.sqrt(d_model)
    weight = jax.random.uniform(k_w, (2, d_model), jnp.float32, -bound, bound)
    bias = jax.random.uniform(k_b, (2,), jnp.float32, -bound, bound)

    # Pooled [CLS] output (batch, d_model)
    pooled_output = jax.random.normal(k_x, (batch, d_model), jnp.float32)

    out = bert_nsp_head(pooled_output, weight, bias)
    out = jax.block_until_ready(out)

    # Reference check against plain JAX (same semantics as nn.Linear)
    ref = pooled_output @ weight.T + bias
    assert out.shape == (batch, 2)
    assert jnp.allclose(out, ref, atol=1e-5, rtol=1e-5)

    print("KERNEL_OK")
</pallas_src>

<mosaic_0001>
module attributes {stable_mosaic.version = 11 : i64} {
  func.func @nsp_head_kernel(%arg0: i32, %arg1: memref<2x32xf32, #tpu.memory_space<vmem>>, %arg2: memref<2x32xf32, #tpu.memory_space<vmem>>, %arg3: memref<2xf32, #tpu.memory_space<smem>>, %arg4: memref<2x2xf32, #tpu.memory_space<vmem>>) attributes {dimension_semantics = [#tpu.dimension_semantics<parallel>], iteration_bounds = array<i64: 1>, scalar_prefetch = 0 : i64, scratch_operands = 0 : i64, tpu.core_type = #tpu.core_type<tc>, window_params = [{transform_indices = @transform_0, window_bounds = array<i64: 2, 32>}, {pipeline_mode = #tpu.pipeline_mode<synchronous>, transform_indices = @transform_1, window_bounds = array<i64: 2, 32>}, {transform_indices = @transform_2, window_bounds = array<i64: 2>}, {transform_indices = @transform_3, window_bounds = array<i64: 2, 2>}]} {
    %c0 = arith.constant 0 : index
    %c0_0 = arith.constant 0 : index
    %0 = vector.load %arg1[%c0, %c0_0] : memref<2x32xf32, #tpu.memory_space<vmem>>, vector<2x32xf32>
    %c0_1 = arith.constant 0 : index
    %c0_2 = arith.constant 0 : index
    %1 = vector.load %arg2[%c0_1, %c0_2] : memref<2x32xf32, #tpu.memory_space<vmem>>, vector<2x32xf32>
    %2 = vector.extract_strided_slice %1 {offsets = [0, 0], sizes = [1, 32], strides = [1, 1]} : vector<2x32xf32> to vector<1x32xf32>
    %3 = vector.broadcast %2 : vector<1x32xf32> to vector<2x32xf32>
    %4 = arith.mulf %0, %3 : vector<2x32xf32>
    %cst = arith.constant dense<0.000000e+00> : vector<2xf32>
    %5 = vector.multi_reduction <add>, %4, %cst [1] : vector<2x32xf32> to vector<2xf32>
    %6 = vector.shape_cast %5 : vector<2xf32> to vector<2x1xf32>
    %c0_3 = arith.constant 0 : index
    %7 = memref.load %arg3[%c0_3] : memref<2xf32, #tpu.memory_space<smem>>
    %8 = vector.broadcast %7 : f32 to vector<2x1xf32>
    %9 = arith.addf %6, %8 : vector<2x1xf32>
    %10 = vector.extract_strided_slice %1 {offsets = [1, 0], sizes = [1, 32], strides = [1, 1]} : vector<2x32xf32> to vector<1x32xf32>
    %11 = vector.broadcast %10 : vector<1x32xf32> to vector<2x32xf32>
    %12 = arith.mulf %0, %11 : vector<2x32xf32>
    %cst_4 = arith.constant dense<0.000000e+00> : vector<2xf32>
    %13 = vector.multi_reduction <add>, %12, %cst_4 [1] : vector<2x32xf32> to vector<2xf32>
    %14 = vector.shape_cast %13 : vector<2xf32> to vector<2x1xf32>
    %c1 = arith.constant 1 : index
    %15 = memref.load %arg3[%c1] : memref<2xf32, #tpu.memory_space<smem>>
    %16 = vector.broadcast %15 : f32 to vector<2x1xf32>
    %17 = arith.addf %14, %16 : vector<2x1xf32>
    %18 = tpu.concatenate %9, %17 in 1 : vector<2x1xf32>, vector<2x1xf32> -> vector<2x2xf32>
    %c0_5 = arith.constant 0 : index
    %c0_6 = arith.constant 0 : index
    %19 = vector.load %arg4[%c0_5, %c0_6] : memref<2x2xf32, #tpu.memory_space<vmem>>, vector<2x2xf32>
    tpu.vector_store %arg4[%c0_5, %c0_6], %18 {strides = array<i32>} : memref<2x2xf32, #tpu.memory_space<vmem>>, vector<2x2xf32>,
    return
  }
  func.func @transform_0(%arg0: i32) -> (i32, i32) {
    %c0_i32 = arith.constant 0 : i32
    %c0_i32_0 = arith.constant 0 : i32
    return %arg0, %c0_i32 : i32, i32
  }
  func.func @transform_1(%arg0: i32) -> (i32, i32) {
    %c0_i32 = arith.constant 0 : i32
    %c0_i32_0 = arith.constant 0 : i32
    %c0_i32_1 = arith.constant 0 : i32
    return %c0_i32, %c0_i32_0 : i32, i32
  }
  func.func @transform_2(%arg0: i32) -> i32 {
    %c0_i32 = arith.constant 0 : i32
    %c0_i32_0 = arith.constant 0 : i32
    return %c0_i32 : i32
  }
  func.func @transform_3(%arg0: i32) -> (i32, i32) {
    %c0_i32 = arith.constant 0 : i32
    %c0_i32_0 = arith.constant 0 : i32
    return %arg0, %c0_i32 : i32, i32
  }
}

</mosaic_0001>

<llo_original>
// kernel: tpu_custom_call.1
$region0: #{tpu_custom_call.1}
  #allocation0 [shape = 'u32[]', space=smem, size = 0x4, offset = 0x4, fixed_abs, tag = 'smem constant byte address 0x4 - core index']
  #allocation1 [shape = 'u32[144,128]{1,0:T(1,128)}', space=vmem, size = 0x12000, scoped, tag = 'internal scratch']
  %s0 = inlined_call_operand.hbm [shape: f32[2,32], index: 0, kind: input, shape index: {}]
  %s1 = inlined_call_operand.hbm [shape: f32[2,32], index: 1, kind: input, shape index: {}]
  %s2 = inlined_call_operand.vmem [shape: f32[2], index: 2, kind: input, shape index: {}]
  %s3 = inlined_call_operand.hbm [shape: f32[2,2], index: 3, kind: output, shape index: {}]
  %s4 = sld [smem:[#allocation0]]
  $region34: #{tpu_custom_call.1} parent=0
    _
  %s6 = ssub.s32 1, %s4
  %s7 = scalar_select 0, %s6, %s4
  $region1: #{tpu_custom_call.1} parent=0
    #allocation2 [shape = 'u8[1024]{0}', space=vmem, size = 0x400, scoped, tag = 'input window, operand 0, single buffered']
    #allocation3 [shape = 's32[1]{0}', space=sflag, size = 0x4, scoped, tag = 'scoped memory for tpu_custom_call.1']
    #allocation4 [shape = 's32[1]{0}', space=sflag, size = 0x4, scoped, tag = 'scoped memory for tpu_custom_call.1']
    #allocation5 [shape = 's32[1]{0}', space=sflag, size = 0x4, scoped, tag = 'scoped memory for tpu_custom_call.1']
    #allocation6 [shape = 'u8[1024]{0}', space=vmem, size = 0x400, scoped, tag = 'input window, operand 1, single buffered']
    #allocation7 [shape = 's32[1]{0}', space=sflag, size = 0x4, scoped, tag = 'scoped memory for tpu_custom_call.1']
    #allocation8 [shape = 'u8[512]{0}', space=smem, size = 0x200, scoped, tag = 'input window, operand 2, single buffered']
    #allocation9 [shape = 'u8[1024]{0}', space=vmem, size = 0x400, scoped, tag = 'output window, operand 0, single buffered']
    %8 = vsyncpa [#allocation3], 0
    %9 = vsyncpa [#allocation7], 0
    %10 = vsyncpa [#allocation5], 0
    %11 = vsyncpa [#allocation4], 0
    // Predicated region
    $region2: #{tpu_custom_call.1} parent=1 // pred_check
      _
    $region3: #{tpu_custom_call.1} parent=1 // pred_check_branch
      %13 = sbr.rel (0) target = $region5
    $region4: #{tpu_custom_call.1} parent=1 // pred_region
      %s15 = ssub.s32 32, 32
      %16 = vsyncadd [#allocation3], %s15
      %s18 = sshll.u32 [#allocation2], 4
      %s19 = int_to_ptr.vmem [resolvable:$true] %s18
      %21 = dma.hbm_to_vmem [thread:$0]  %s0, 32, %s19, [#allocation3]
    $region5: #{tpu_custom_call.1} parent=1 // pred_fallthru
      _
    // Predicated region
    $region6: #{tpu_custom_call.1} parent=1 // pred_check
      _
    $region7: #{tpu_custom_call.1} parent=1 // pred_check_branch
      %23 = sbr.rel (0) target = $region9
    $region8: #{tpu_custom_call.1} parent=1 // pred_region
      %s25 = ssub.s32 32, 32
      %26 = vsyncadd [#allocation7], %s25
      %s28 = sshll.u32 [#allocation6], 4
      %s29 = int_to_ptr.vmem [resolvable:$true] %s28
      %31 = dma.hbm_to_vmem [thread:$0]  %s1, 32, %s29, [#allocation7]
    $region9: #{tpu_custom_call.1} parent=1 // pred_fallthru
      _
    // Predicated region
    $region10: #{tpu_custom_call.1} parent=1 // pred_check
      _
    $region11: #{tpu_custom_call.1} parent=1 // pred_check_branch
      %33 = sbr.rel (0) target = $region13
    $region12: #{tpu_custom_call.1} parent=1 // pred_region
      %s35 = ssub.s32 16, 16
      %36 = vsyncadd [#allocation5], %s35
      %s38 = sshll.u32 %s2, 4
      %s39 = int_to_ptr.vmem [resolvable:$true] %s38
      %41 = dma.vmem_to_smem %s39, 16, [#allocation8], [#allocation5]
    $region13: #{tpu_custom_call.1} parent=1 // pred_fallthru
      _
    // Predicated region
    $region14: #{tpu_custom_call.1} parent=1 // pred_check
      _
    $region15: #{tpu_custom_call.1} parent=1 // pred_check_branch
      %43 = sbr.rel (0) target = $region17
    $region16: #{tpu_custom_call.1} parent=1 // pred_region
      %44 = dma.done [#allocation3], 32
    $region17: #{tpu_custom_call.1} parent=1 // pred_fallthru
      _
    // Predicated region
    $region18: #{tpu_custom_call.1} parent=1 // pred_check
      _
    $region19: #{tpu_custom_call.1} parent=1 // pred_check_branch
      %46 = sbr.rel (0) target = $region21
    $region20: #{tpu_custom_call.1} parent=1 // pred_region
      %47 = dma.done [#allocation7], 32
    $region21: #{tpu_custom_call.1} parent=1 // pred_fallthru
      _
    // Predicated region
    $region22: #{tpu_custom_call.1} parent=1 // pred_check
      _
    $region23: #{tpu_custom_call.1} parent=1 // pred_check_branch
      %49 = sbr.rel (0) target = $region25
    $region24: #{tpu_custom_call.1} parent=1 // pred_region
      %50 = dma.done [#allocation5], 16
    $region25: #{tpu_custom_call.1} parent=1 // pred_fallthru
      _
    %51 = sfence
    %v52 = vld [vmem:[#allocation2] sm:$0x3]
    %v53 = vld [vmem:[#allocation6] sm:$0x3]
    %v54 = vlaneseq
    %v55 = vshrl.u32 %v54, 7
    %v56 = vsub.s32 0, %v55
    %v57 = vrot.slane %v53, %v56
    %v58 = vmul.f32 %v52, %v57
    %vm59 = vcmask 254976
    %v60 = vsel %vm59, %v58, 0.0
    %61 = vadd.xlane.f32.xlu0 %v60
    %v62 = vpop.xlane.xlu0 %61
    %s63 = sld [smem:[#allocation8]]
    %v64 = vstv %s63
    %v65 = vadd.f32 %v62, %v64
    %v66 = vlaneseq
    %v67 = vshrl.u32 %v66, 7
    %v68 = vsub.s32 1, %v67
    %v69 = vrot.slane %v53, %v68
    %v70 = vmul.f32 %v52, %v69
    %v71 = vsel %vm59, %v70, 0.0
    %72 = vadd.xlane.f32.xlu0 %v71
    %v73 = vpop.xlane.xlu0 %72
    %s74 = sld [smem:[#allocation8 + $0x1]]
    %v75 = vstv %s74
    %v76 = vadd.f32 %v73, %v75
    %vm77 = vcmask 7168
    %v78 = vsel %vm77, %v65, %v76
    %vm79 = vcmask 9216
    %80 = vst.msk [vmem:[#allocation9] sm:$0x3] %vm79, %v78
    // Predicated region
    $region26: #{tpu_custom_call.1} parent=1 // pred_check
      _
    $region27: #{tpu_custom_call.1} parent=1 // pred_check_branch
      %82 = sbr.rel (0) target = $region29
    $region28: #{tpu_custom_call.1} parent=1 // pred_region
      %s84 = ssub.s32 32, 32
      %85 = vsyncadd [#allocation4], %s84
      %s87 = sshll.u32 [#allocation9], 4
      %s88 = int_to_ptr.vmem [resolvable:$true] %s87
      %90 = dma.vmem_to_hbm [thread:$0]  %s88, 32, %s3, [#allocation4]
    $region29: #{tpu_custom_call.1} parent=1 // pred_fallthru
      _
    // Predicated region
    $region30: #{tpu_custom_call.1} parent=1 // pred_check
      _
    $region31: #{tpu_custom_call.1} parent=1 // pred_check_branch
      %92 = sbr.rel (0) target = $region33
    $region32: #{tpu_custom_call.1} parent=1 // pred_region
      %93 = dma.done [#allocation4], 32
    $region33: #{tpu_custom_call.1} parent=1 // pred_fallthru
      _
    %94 = vsyncpa [#allocation3], 1
    %95 = vsyncpa [#allocation7], 1
    %96 = vsyncpa [#allocation4], 1
    %97 = vsyncpa [#allocation5], 1

</llo_original>
